<compile_context>
chip_gen: v7x
topology: tpu7x:2x2x1
jax: 0.10.0
libtpu: 0.0.40
codegen_flags: <defaults>
</compile_context>

<pallas_src>
import jax
import jax.numpy as jnp
from jax.experimental import pallas as pl
from jax.experimental.pallas import tpu as pltpu


def _make_dfl_kernel(C, tr, chunk):
    """Kernel over one (1, C, tr, 128) input tile -> (1, tr, 128) output tile."""
    n_chunks = tr // chunk

    def kernel(x_ref, o_ref):
        # Loop over small row chunks so accumulators stay in a few vregs even
        # when the DMA tile (tr) is large.
        for ci in range(n_chunks):
            r0 = ci * chunk
            r1 = r0 + chunk
            # Pass 1: running max over channels (dense (chunk, 128) vregs).
            m = x_ref[0, 0, r0:r1, :].astype(jnp.float32)
            for k in range(1, C):
                m = jnp.maximum(m, x_ref[0, k, r0:r1, :].astype(jnp.float32))
            # Pass 2: exp + weighted accumulation with scalar channel weights.
            sum_e = jnp.zeros_like(m)
            sum_ew = jnp.zeros_like(m)
            for k in range(C):
                e_k = jnp.exp(x_ref[0, k, r0:r1, :].astype(jnp.float32) - m)
                sum_e = sum_e + e_k
                if k > 0:
                    sum_ew = sum_ew + e_k * float(k)
            # Single exact divide on the reduced, output-sized chunk.
            o_ref[0, r0:r1, :] = (sum_ew / sum_e).astype(o_ref.dtype)

    return kernel


@jax.jit
def dfl_forward(x: jax.Array) -> jax.Array:
    """DFL forward: x (B, C, H, W) -> (B, H, W), matching DFL.forward."""
    B, C, H, W = x.shape
    A = H * W

    # Lane-dense view of the spatial axis: R rows of 128 lanes.
    A128 = pl.cdiv(A, 128) * 128
    x_flat = x.reshape(B, C, A)
    if A128 != A:
        # TODO(synk): this pad is a full-tensor HBM copy; it only triggers when
        # H*W is not a multiple of 128.  A fully pad-free path would need a
        # manual ragged-tail DMA; padded columns are discarded after the call.
        x_flat = jnp.pad(x_flat, ((0, 0), (0, 0), (0, A128 - A)))
    R = A128 // 128
    x4 = x_flat.reshape(B, C, R, 128)

    in_itemsize = x.dtype.itemsize
    # ~4 MB input tile per grid step: big enough to hide per-step overhead,
    # small enough (double-buffered) for v7x's 64 MiB VMEM on every dtype/C.
    target_tile_bytes = 4 * 1024 * 1024
    tr_target = max(8, target_tile_bytes // (C * 128 * in_itemsize))
    # Guarantee >= 2 grid steps so dual-TensorCore chips shard the work.
    min_tiles = 2 if (B == 1 and R >= 16) else 1

    if R < 8:
        tr = R                      # block equals full dim -> allowed
        chunk = tr
    else:
        nt0 = max(min_tiles, pl.cdiv(R, tr_target))
        tr = pl.cdiv(pl.cdiv(R, nt0), 8) * 8        # balanced, multiple of 8
        tr = max(8, min(tr, (R // 8) * 8))          # never exceed the array
        chunk = 32 if tr % 32 == 0 else (16 if tr % 16 == 0 else 8)
    nt = pl.cdiv(R, tr)             # ragged last block is masked by Pallas

    in_tile_bytes = C * tr * 128 * in_itemsize
    out_tile_bytes = tr * 128 * in_itemsize
    vmem_need = 2 * (in_tile_bytes + out_tile_bytes)
    vmem_limit = int(min(48 << 20, max(32 << 20, 2 * vmem_need)))

    cost = pl.CostEstimate(
        flops=6 * B * C * A,
        transcendentals=B * C * A,
        bytes_accessed=B * C * A128 * in_itemsize + B * A128 * in_itemsize,
    )

    out = pl.pallas_call(
        _make_dfl_kernel(C, tr, chunk),
        out_shape=jax.ShapeDtypeStruct((B, R, 128), x.dtype),
        grid_spec=pltpu.PrefetchScalarGridSpec(
            num_scalar_prefetch=0,
            grid=(B, nt),
            in_specs=[pl.BlockSpec((1, C, tr, 128), lambda b, t: (b, 0, t, 0))],
            out_specs=pl.BlockSpec((1, tr, 128), lambda b, t: (b, t, 0)),
        ),
        compiler_params=pltpu.CompilerParams(
            dimension_semantics=("parallel", "parallel"),
            vmem_limit_bytes=vmem_limit,
        ),
        cost_estimate=cost,
    )(x4)

    return out.reshape(B, A128)[:, :A].reshape(B, H, W)


def dfl_reference(x: jax.Array) -> jax.Array:
    # Pure-JAX reference of the PyTorch module (conv weight = arange(C)).
    B, C, H, W = x.shape
    p = jax.nn.softmax(x.astype(jnp.float32), axis=1)
    w = jnp.arange(C, dtype=jnp.float32).reshape(1, C, 1, 1)
    return jnp.sum(p * w, axis=1)


if __name__ == "__main__":
    key = jax.random.PRNGKey(0)

    # Primary check: typical DFL head (reg_max = 16 channels), aligned spatial.
    B, C, H, W = 2, 16, 16, 16
    x = jax.random.normal(key, (B, C, H, W), dtype=jnp.float32)
    out = jax.block_until_ready(dfl_forward(x))
    ref = jax.block_until_ready(dfl_reference(x))
    assert out.shape == (B, H, W), out.shape
    assert jnp.allclose(out, ref, atol=1e-4, rtol=1e-4), (
        float(jnp.max(jnp.abs(out - ref))))

    # Non-128-aligned spatial extent: exercises the masked ragged row blocks.
    x2 = jax.random.normal(jax.random.PRNGKey(1), (1, 16, 36, 36),
                           dtype=jnp.float32)
    out2 = jax.block_until_ready(dfl_forward(x2))
    ref2 = jax.block_until_ready(dfl_reference(x2))
    assert out2.shape == (1, 36, 36), out2.shape
    assert jnp.allclose(out2, ref2, atol=1e-4, rtol=1e-4), (
        float(jnp.max(jnp.abs(out2 - ref2))))

    # bf16 inputs: the kernel upcasts to f32 internally; output keeps the
    # input dtype (bf16 resolution for values up to C-1=15 is ~0.06).
    x_bf16 = x.astype(jnp.bfloat16)
    out_bf16 = jax.block_until_ready(dfl_forward(x_bf16))
    ref_bf16 = dfl_reference(x_bf16)
    assert out_bf16.dtype == jnp.bfloat16
    assert jnp.allclose(out_bf16.astype(jnp.float32), ref_bf16,
                        atol=0.1, rtol=0.05)

    print("KERNEL_OK")
</pallas_src>

<mosaic_0001>
module attributes {stable_mosaic.version = 11 : i64} {
  func.func @kernel(%arg0: i32, %arg1: i32, %arg2: memref<1x16x2x128xf32, #tpu.memory_space<vmem>>, %arg3: memref<1x2x128xf32, #tpu.memory_space<vmem>>) attributes {dimension_semantics = [#tpu.dimension_semantics<parallel>, #tpu.dimension_semantics<parallel>], iteration_bounds = array<i64: 2, 1>, scalar_prefetch = 0 : i64, scratch_operands = 0 : i64, tpu.core_type = #tpu.core_type<tc>, window_params = [{transform_indices = @transform_0, window_bounds = array<i64: 1, 16, 2, 128>}, {transform_indices = @transform_1, window_bounds = array<i64: 1, 2, 128>}]} {
    %c0 = arith.constant 0 : index
    %c0_0 = arith.constant 0 : index
    %c0_1 = arith.constant 0 : index
    %c0_2 = arith.constant 0 : index
    %0 = vector.load %arg2[%c0, %c0_0, %c0_1, %c0_2] : memref<1x16x2x128xf32, #tpu.memory_space<vmem>>, vector<1x1x2x128xf32>
    %1 = vector.shape_cast %0 : vector<1x1x2x128xf32> to vector<2x128xf32>
    %c0_3 = arith.constant 0 : index
    %c1 = arith.constant 1 : index
    %c0_4 = arith.constant 0 : index
    %c0_5 = arith.constant 0 : index
    %2 = vector.load %arg2[%c0_3, %c1, %c0_4, %c0_5] : memref<1x16x2x128xf32, #tpu.memory_space<vmem>>, vector<1x1x2x128xf32>
    %3 = vector.shape_cast %2 : vector<1x1x2x128xf32> to vector<2x128xf32>
    %4 = arith.maximumf %1, %3 : vector<2x128xf32>
    %c0_6 = arith.constant 0 : index
    %c2 = arith.constant 2 : index
    %c0_7 = arith.constant 0 : index
    %c0_8 = arith.constant 0 : index
    %5 = vector.load %arg2[%c0_6, %c2, %c0_7, %c0_8] : memref<1x16x2x128xf32, #tpu.memory_space<vmem>>, vector<1x1x2x128xf32>
    %6 = vector.shape_cast %5 : vector<1x1x2x128xf32> to vector<2x128xf32>
    %7 = arith.maximumf %4, %6 : vector<2x128xf32>
    %c0_9 = arith.constant 0 : index
    %c3 = arith.constant 3 : index
    %c0_10 = arith.constant 0 : index
    %c0_11 = arith.constant 0 : index
    %8 = vector.load %arg2[%c0_9, %c3, %c0_10, %c0_11] : memref<1x16x2x128xf32, #tpu.memory_space<vmem>>, vector<1x1x2x128xf32>
    %9 = vector.shape_cast %8 : vector<1x1x2x128xf32> to vector<2x128xf32>
    %10 = arith.maximumf %7, %9 : vector<2x128xf32>
    %c0_12 = arith.constant 0 : index
    %c4 = arith.constant 4 : index
    %c0_13 = arith.constant 0 : index
    %c0_14 = arith.constant 0 : index
    %11 = vector.load %arg2[%c0_12, %c4, %c0_13, %c0_14] : memref<1x16x2x128xf32, #tpu.memory_space<vmem>>, vector<1x1x2x128xf32>
    %12 = vector.shape_cast %11 : vector<1x1x2x128xf32> to vector<2x128xf32>
    %13 = arith.maximumf %10, %12 : vector<2x128xf32>
    %c0_15 = arith.constant 0 : index
    %c5 = arith.constant 5 : index
    %c0_16 = arith.constant 0 : index
    %c0_17 = arith.constant 0 : index
    %14 = vector.load %arg2[%c0_15, %c5, %c0_16, %c0_17] : memref<1x16x2x128xf32, #tpu.memory_space<vmem>>, vector<1x1x2x128xf32>
    %15 = vector.shape_cast %14 : vector<1x1x2x128xf32> to vector<2x128xf32>
    %16 = arith.maximumf %13, %15 : vector<2x128xf32>
    %c0_18 = arith.constant 0 : index
    %c6 = arith.constant 6 : index
    %c0_19 = arith.constant 0 : index
    %c0_20 = arith.constant 0 : index
    %17 = vector.load %arg2[%c0_18, %c6, %c0_19, %c0_20] : memref<1x16x2x128xf32, #tpu.memory_space<vmem>>, vector<1x1x2x128xf32>
    %18 = vector.shape_cast %17 : vector<1x1x2x128xf32> to vector<2x128xf32>
    %19 = arith.maximumf %16, %18 : vector<2x128xf32>
    %c0_21 = arith.constant 0 : index
    %c7 = arith.constant 7 : index
    %c0_22 = arith.constant 0 : index
    %c0_23 = arith.constant 0 : index
    %20 = vector.load %arg2[%c0_21, %c7, %c0_22, %c0_23] : memref<1x16x2x128xf32, #tpu.memory_space<vmem>>, vector<1x1x2x128xf32>
    %21 = vector.shape_cast %20 : vector<1x1x2x128xf32> to vector<2x128xf32>
    %22 = arith.maximumf %19, %21 : vector<2x128xf32>
    %c0_24 = arith.constant 0 : index
    %c8 = arith.constant 8 : index
    %c0_25 = arith.constant 0 : index
    %c0_26 = arith.constant 0 : index
    %23 = vector.load %arg2[%c0_24, %c8, %c0_25, %c0_26] : memref<1x16x2x128xf32, #tpu.memory_space<vmem>>, vector<1x1x2x128xf32>
    %24 = vector.shape_cast %23 : vector<1x1x2x128xf32> to vector<2x128xf32>
    %25 = arith.maximumf %22, %24 : vector<2x128xf32>
    %c0_27 = arith.constant 0 : index
    %c9 = arith.constant 9 : index
    %c0_28 = arith.constant 0 : index
    %c0_29 = arith.constant 0 : index
    %26 = vector.load %arg2[%c0_27, %c9, %c0_28, %c0_29] : memref<1x16x2x128xf32, #tpu.memory_space<vmem>>, vector<1x1x2x128xf32>
    %27 = vector.shape_cast %26 : vector<1x1x2x128xf32> to vector<2x128xf32>
    %28 = arith.maximumf %25, %27 : vector<2x128xf32>
    %c0_30 = arith.constant 0 : index
    %c10 = arith.constant 10 : index
    %c0_31 = arith.constant 0 : index
    %c0_32 = arith.constant 0 : index
    %29 = vector.load %arg2[%c0_30, %c10, %c0_31, %c0_32] : memref<1x16x2x128xf32, #tpu.memory_space<vmem>>, vector<1x1x2x128xf32>
    %30 = vector.shape_cast %29 : vector<1x1x2x128xf32> to vector<2x128xf32>
    %31 = arith.maximumf %28, %30 : vector<2x128xf32>
    %c0_33 = arith.constant 0 : index
    %c11 = arith.constant 11 : index
    %c0_34 = arith.constant 0 : index
    %c0_35 = arith.constant 0 : index
    %32 = vector.load %arg2[%c0_33, %c11, %c0_34, %c0_35] : memref<1x16x2x128xf32, #tpu.memory_space<vmem>>, vector<1x1x2x128xf32>
    %33 = vector.shape_cast %32 : vector<1x1x2x128xf32> to vector<2x128xf32>
    %34 = arith.maximumf %31, %33 : vector<2x128xf32>
    %c0_36 = arith.constant 0 : index
    %c12 = arith.constant 12 : index
    %c0_37 = arith.constant 0 : index
    %c0_38 = arith.constant 0 : index
    %35 = vector.load %arg2[%c0_36, %c12, %c0_37, %c0_38] : memref<1x16x2x128xf32, #tpu.memory_space<vmem>>, vector<1x1x2x128xf32>
    %36 = vector.shape_cast %35 : vector<1x1x2x128xf32> to vector<2x128xf32>
    %37 = arith.maximumf %34, %36 : vector<2x128xf32>
    %c0_39 = arith.constant 0 : index
    %c13 = arith.constant 13 : index
    %c0_40 = arith.constant 0 : index
    %c0_41 = arith.constant 0 : index
    %38 = vector.load %arg2[%c0_39, %c13, %c0_40, %c0_41] : memref<1x16x2x128xf32, #tpu.memory_space<vmem>>, vector<1x1x2x128xf32>
    %39 = vector.shape_cast %38 : vector<1x1x2x128xf32> to vector<2x128xf32>
    %40 = arith.maximumf %37, %39 : vector<2x128xf32>
    %c0_42 = arith.constant 0 : index
    %c14 = arith.constant 14 : index
    %c0_43 = arith.constant 0 : index
    %c0_44 = arith.constant 0 : index
    %41 = vector.load %arg2[%c0_42, %c14, %c0_43, %c0_44] : memref<1x16x2x128xf32, #tpu.memory_space<vmem>>, vector<1x1x2x128xf32>
    %42 = vector.shape_cast %41 : vector<1x1x2x128xf32> to vector<2x128xf32>
    %43 = arith.maximumf %40, %42 : vector<2x128xf32>
    %c0_45 = arith.constant 0 : index
    %c15 = arith.constant 15 : index
    %c0_46 = arith.constant 0 : index
    %c0_47 = arith.constant 0 : index
    %44 = vector.load %arg2[%c0_45, %c15, %c0_46, %c0_47] : memref<1x16x2x128xf32, #tpu.memory_space<vmem>>, vector<1x1x2x128xf32>
    %45 = vector.shape_cast %44 : vector<1x1x2x128xf32> to vector<2x128xf32>
    %46 = arith.maximumf %43, %45 : vector<2x128xf32>
    %cst = arith.constant 0.000000e+00 : f32
    %47 = vector.broadcast %cst : f32 to vector<2x128xf32>
    %cst_48 = arith.constant 0.000000e+00 : f32
    %48 = vector.broadcast %cst_48 : f32 to vector<2x128xf32>
    %c0_49 = arith.constant 0 : index
    %c0_50 = arith.constant 0 : index
    %c0_51 = arith.constant 0 : index
    %c0_52 = arith.constant 0 : index
    %49 = vector.load %arg2[%c0_49, %c0_50, %c0_51, %c0_52] : memref<1x16x2x128xf32, #tpu.memory_space<vmem>>, vector<1x1x2x128xf32>
    %50 = vector.shape_cast %49 : vector<1x1x2x128xf32> to vector<2x128xf32>
    %51 = arith.subf %50, %46 : vector<2x128xf32>
    %52 = math.exp %51 : vector<2x128xf32>
    %53 = arith.addf %47, %52 : vector<2x128xf32>
    %c0_53 = arith.constant 0 : index
    %c1_54 = arith.constant 1 : index
    %c0_55 = arith.constant 0 : index
    %c0_56 = arith.constant 0 : index
    %54 = vector.load %arg2[%c0_53, %c1_54, %c0_55, %c0_56] : memref<1x16x2x128xf32, #tpu.memory_space<vmem>>, vector<1x1x2x128xf32>
    %55 = vector.shape_cast %54 : vector<1x1x2x128xf32> to vector<2x128xf32>
    %56 = arith.subf %55, %46 : vector<2x128xf32>
    %57 = math.exp %56 : vector<2x128xf32>
    %58 = arith.addf %53, %57 : vector<2x128xf32>
    %cst_57 = arith.constant 1.000000e+00 : f32
    %59 = vector.broadcast %cst_57 : f32 to vector<2x128xf32>
    %60 = arith.mulf %57, %59 : vector<2x128xf32>
    %61 = arith.addf %48, %60 : vector<2x128xf32>
    %c0_58 = arith.constant 0 : index
    %c2_59 = arith.constant 2 : index
    %c0_60 = arith.constant 0 : index
    %c0_61 = arith.constant 0 : index
    %62 = vector.load %arg2[%c0_58, %c2_59, %c0_60, %c0_61] : memref<1x16x2x128xf32, #tpu.memory_space<vmem>>, vector<1x1x2x128xf32>
    %63 = vector.shape_cast %62 : vector<1x1x2x128xf32> to vector<2x128xf32>
    %64 = arith.subf %63, %46 : vector<2x128xf32>
    %65 = math.exp %64 : vector<2x128xf32>
    %66 = arith.addf %58, %65 : vector<2x128xf32>
    %cst_62 = arith.constant 2.000000e+00 : f32
    %67 = vector.broadcast %cst_62 : f32 to vector<2x128xf32>
    %68 = arith.mulf %65, %67 : vector<2x128xf32>
    %69 = arith.addf %61, %68 : vector<2x128xf32>
    %c0_63 = arith.constant 0 : index
    %c3_64 = arith.constant 3 : index
    %c0_65 = arith.constant 0 : index
    %c0_66 = arith.constant 0 : index
    %70 = vector.load %arg2[%c0_63, %c3_64, %c0_65, %c0_66] : memref<1x16x2x128xf32, #tpu.memory_space<vmem>>, vector<1x1x2x128xf32>
    %71 = vector.shape_cast %70 : vector<1x1x2x128xf32> to vector<2x128xf32>
    %72 = arith.subf %71, %46 : vector<2x128xf32>
    %73 = math.exp %72 : vector<2x128xf32>
    %74 = arith.addf %66, %73 : vector<2x128xf32>
    %cst_67 = arith.constant 3.000000e+00 : f32
    %75 = vector.broadcast %cst_67 : f32 to vector<2x128xf32>
    %76 = arith.mulf %73, %75 : vector<2x128xf32>
    %77 = arith.addf %69, %76 : vector<2x128xf32>
    %c0_68 = arith.constant 0 : index
    %c4_69 = arith.constant 4 : index
    %c0_70 = arith.constant 0 : index
    %c0_71 = arith.constant 0 : index
    %78 = vector.load %arg2[%c0_68, %c4_69, %c0_70, %c0_71] : memref<1x16x2x128xf32, #tpu.memory_space<vmem>>, vector<1x1x2x128xf32>
    %79 = vector.shape_cast %78 : vector<1x1x2x128xf32> to vector<2x128xf32>
    %80 = arith.subf %79, %46 : vector<2x128xf32>
    %81 = math.exp %80 : vector<2x128xf32>
    %82 = arith.addf %74, %81 : vector<2x128xf32>
    %cst_72 = arith.constant 4.000000e+00 : f32
    %83 = vector.broadcast %cst_72 : f32 to vector<2x128xf32>
    %84 = arith.mulf %81, %83 : vector<2x128xf32>
    %85 = arith.addf %77, %84 : vector<2x128xf32>
    %c0_73 = arith.constant 0 : index
    %c5_74 = arith.constant 5 : index
    %c0_75 = arith.constant 0 : index
    %c0_76 = arith.constant 0 : index
    %86 = vector.load %arg2[%c0_73, %c5_74, %c0_75, %c0_76] : memref<1x16x2x128xf32, #tpu.memory_space<vmem>>, vector<1x1x2x128xf32>
    %87 = vector.shape_cast %86 : vector<1x1x2x128xf32> to vector<2x128xf32>
    %88 = arith.subf %87, %46 : vector<2x128xf32>
    %89 = math.exp %88 : vector<2x128xf32>
    %90 = arith.addf %82, %89 : vector<2x128xf32>
    %cst_77 = arith.constant 5.000000e+00 : f32
    %91 = vector.broadcast %cst_77 : f32 to vector<2x128xf32>
    %92 = arith.mulf %89, %91 : vector<2x128xf32>
    %93 = arith.addf %85, %92 : vector<2x128xf32>
    %c0_78 = arith.constant 0 : index
    %c6_79 = arith.constant 6 : index
    %c0_80 = arith.constant 0 : index
    %c0_81 = arith.constant 0 : index
    %94 = vector.load %arg2[%c0_78, %c6_79, %c0_80, %c0_81] : memref<1x16x2x128xf32, #tpu.memory_space<vmem>>, vector<1x1x2x128xf32>
    %95 = vector.shape_cast %94 : vector<1x1x2x128xf32> to vector<2x128xf32>
    %96 = arith.subf %95, %46 : vector<2x128xf32>
    %97 = math.exp %96 : vector<2x128xf32>
    %98 = arith.addf %90, %97 : vector<2x128xf32>
    %cst_82 = arith.constant 6.000000e+00 : f32
    %99 = vector.broadcast %cst_82 : f32 to vector<2x128xf32>
    %100 = arith.mulf %97, %99 : vector<2x128xf32>
    %101 = arith.addf %93, %100 : vector<2x128xf32>
    %c0_83 = arith.constant 0 : index
    %c7_84 = arith.constant 7 : index
    %c0_85 = arith.constant 0 : index
    %c0_86 = arith.constant 0 : index
    %102 = vector.load %arg2[%c0_83, %c7_84, %c0_85, %c0_86] : memref<1x16x2x128xf32, #tpu.memory_space<vmem>>, vector<1x1x2x128xf32>
    %103 = vector.shape_cast %102 : vector<1x1x2x128xf32> to vector<2x128xf32>
    %104 = arith.subf %103, %46 : vector<2x128xf32>
    %105 = math.exp %104 : vector<2x128xf32>
    %106 = arith.addf %98, %105 : vector<2x128xf32>
    %cst_87 = arith.constant 7.000000e+00 : f32
    %107 = vector.broadcast %cst_87 : f32 to vector<2x128xf32>
    %108 = arith.mulf %105, %107 : vector<2x128xf32>
    %109 = arith.addf %101, %108 : vector<2x128xf32>
    %c0_88 = arith.constant 0 : index
    %c8_89 = arith.constant 8 : index
    %c0_90 = arith.constant 0 : index
    %c0_91 = arith.constant 0 : index
    %110 = vector.load %arg2[%c0_88, %c8_89, %c0_90, %c0_91] : memref<1x16x2x128xf32, #tpu.memory_space<vmem>>, vector<1x1x2x128xf32>
    %111 = vector.shape_cast %110 : vector<1x1x2x128xf32> to vector<2x128xf32>
    %112 = arith.subf %111, %46 : vector<2x128xf32>
    %113 = math.exp %112 : vector<2x128xf32>
    %114 = arith.addf %106, %113 : vector<2x128xf32>
    %cst_92 = arith.constant 8.000000e+00 : f32
    %115 = vector.broadcast %cst_92 : f32 to vector<2x128xf32>
    %116 = arith.mulf %113, %115 : vector<2x128xf32>
    %117 = arith.addf %109, %116 : vector<2x128xf32>
    %c0_93 = arith.constant 0 : index
    %c9_94 = arith.constant 9 : index
    %c0_95 = arith.constant 0 : index
    %c0_96 = arith.constant 0 : index
    %118 = vector.load %arg2[%c0_93, %c9_94, %c0_95, %c0_96] : memref<1x16x2x128xf32, #tpu.memory_space<vmem>>, vector<1x1x2x128xf32>
    %119 = vector.shape_cast %118 : vector<1x1x2x128xf32> to vector<2x128xf32>
    %120 = arith.subf %119, %46 : vector<2x128xf32>
    %121 = math.exp %120 : vector<2x128xf32>
    %122 = arith.addf %114, %121 : vector<2x128xf32>
    %cst_97 = arith.constant 9.000000e+00 : f32
    %123 = vector.broadcast %cst_97 : f32 to vector<2x128xf32>
    %124 = arith.mulf %121, %123 : vector<2x128xf32>
    %125 = arith.addf %117, %124 : vector<2x128xf32>
    %c0_98 = arith.constant 0 : index
    %c10_99 = arith.constant 10 : index
    %c0_100 = arith.constant 0 : index
    %c0_101 = arith.constant 0 : index
    %126 = vector.load %arg2[%c0_98, %c10_99, %c0_100, %c0_101] : memref<1x16x2x128xf32, #tpu.memory_space<vmem>>, vector<1x1x2x128xf32>
    %127 = vector.shape_cast %126 : vector<1x1x2x128xf32> to vector<2x128xf32>
    %128 = arith.subf %127, %46 : vector<2x128xf32>
    %129 = math.exp %128 : vector<2x128xf32>
    %130 = arith.addf %122, %129 : vector<2x128xf32>
    %cst_102 = arith.constant 1.000000e+01 : f32
    %131 = vector.broadcast %cst_102 : f32 to vector<2x128xf32>
    %132 = arith.mulf %129, %131 : vector<2x128xf32>
    %133 = arith.addf %125, %132 : vector<2x128xf32>
    %c0_103 = arith.constant 0 : index
    %c11_104 = arith.constant 11 : index
    %c0_105 = arith.constant 0 : index
    %c0_106 = arith.constant 0 : index
    %134 = vector.load %arg2[%c0_103, %c11_104, %c0_105, %c0_106] : memref<1x16x2x128xf32, #tpu.memory_space<vmem>>, vector<1x1x2x128xf32>
    %135 = vector.shape_cast %134 : vector<1x1x2x128xf32> to vector<2x128xf32>
    %136 = arith.subf %135, %46 : vector<2x128xf32>
    %137 = math.exp %136 : vector<2x128xf32>
    %138 = arith.addf %130, %137 : vector<2x128xf32>
    %cst_107 = arith.constant 1.100000e+01 : f32
    %139 = vector.broadcast %cst_107 : f32 to vector<2x128xf32>
    %140 = arith.mulf %137, %139 : vector<2x128xf32>
    %141 = arith.addf %133, %140 : vector<2x128xf32>
    %c0_108 = arith.constant 0 : index
    %c12_109 = arith.constant 12 : index
    %c0_110 = arith.constant 0 : index
    %c0_111 = arith.constant 0 : index
    %142 = vector.load %arg2[%c0_108, %c12_109, %c0_110, %c0_111] : memref<1x16x2x128xf32, #tpu.memory_space<vmem>>, vector<1x1x2x128xf32>
    %143 = vector.shape_cast %142 : vector<1x1x2x128xf32> to vector<2x128xf32>
    %144 = arith.subf %143, %46 : vector<2x128xf32>
    %145 = math.exp %144 : vector<2x128xf32>
    %146 = arith.addf %138, %145 : vector<2x128xf32>
    %cst_112 = arith.constant 1.200000e+01 : f32
    %147 = vector.broadcast %cst_112 : f32 to vector<2x128xf32>
    %148 = arith.mulf %145, %147 : vector<2x128xf32>
    %149 = arith.addf %141, %148 : vector<2x128xf32>
    %c0_113 = arith.constant 0 : index
    %c13_114 = arith.constant 13 : index
    %c0_115 = arith.constant 0 : index
    %c0_116 = arith.constant 0 : index
    %150 = vector.load %arg2[%c0_113, %c13_114, %c0_115, %c0_116] : memref<1x16x2x128xf32, #tpu.memory_space<vmem>>, vector<1x1x2x128xf32>
    %151 = vector.shape_cast %150 : vector<1x1x2x128xf32> to vector<2x128xf32>
    %152 = arith.subf %151, %46 : vector<2x128xf32>
    %153 = math.exp %152 : vector<2x128xf32>
    %154 = arith.addf %146, %153 : vector<2x128xf32>
    %cst_117 = arith.constant 1.300000e+01 : f32
    %155 = vector.broadcast %cst_117 : f32 to vector<2x128xf32>
    %156 = arith.mulf %153, %155 : vector<2x128xf32>
    %157 = arith.addf %149, %156 : vector<2x128xf32>
    %c0_118 = arith.constant 0 : index
    %c14_119 = arith.constant 14 : index
    %c0_120 = arith.constant 0 : index
    %c0_121 = arith.constant 0 : index
    %158 = vector.load %arg2[%c0_118, %c14_119, %c0_120, %c0_121] : memref<1x16x2x128xf32, #tpu.memory_space<vmem>>, vector<1x1x2x128xf32>
    %159 = vector.shape_cast %158 : vector<1x1x2x128xf32> to vector<2x128xf32>
    %160 = arith.subf %159, %46 : vector<2x128xf32>
    %161 = math.exp %160 : vector<2x128xf32>
    %162 = arith.addf %154, %161 : vector<2x128xf32>
    %cst_122 = arith.constant 1.400000e+01 : f32
    %163 = vector.broadcast %cst_122 : f32 to vector<2x128xf32>
    %164 = arith.mulf %161, %163 : vector<2x128xf32>
    %165 = arith.addf %157, %164 : vector<2x128xf32>
    %c0_123 = arith.constant 0 : index
    %c15_124 = arith.constant 15 : index
    %c0_125 = arith.constant 0 : index
    %c0_126 = arith.constant 0 : index
    %166 = vector.load %arg2[%c0_123, %c15_124, %c0_125, %c0_126] : memref<1x16x2x128xf32, #tpu.memory_space<vmem>>, vector<1x1x2x128xf32>
    %167 = vector.shape_cast %166 : vector<1x1x2x128xf32> to vector<2x128xf32>
    %168 = arith.subf %167, %46 : vector<2x128xf32>
    %169 = math.exp %168 : vector<2x128xf32>
    %170 = arith.addf %162, %169 : vector<2x128xf32>
    %cst_127 = arith.constant 1.500000e+01 : f32
    %171 = vector.broadcast %cst_127 : f32 to vector<2x128xf32>
    %172 = arith.mulf %169, %171 : vector<2x128xf32>
    %173 = arith.addf %165, %172 : vector<2x128xf32>
    %174 = arith.divf %173, %170 : vector<2x128xf32>
    %c0_128 = arith.constant 0 : index
    %c0_129 = arith.constant 0 : index
    %c0_130 = arith.constant 0 : index
    %175 = vector.load %arg3[%c0_128, %c0_129, %c0_130] : memref<1x2x128xf32, #tpu.memory_space<vmem>>, vector<1x2x128xf32>
    %176 = vector.shape_cast %175 : vector<1x2x128xf32> to vector<2x128xf32>
    %177 = vector.shape_cast %174 : vector<2x128xf32> to vector<1x2x128xf32>
    tpu.vector_store %arg3[%c0_128, %c0_129, %c0_130], %177 {strides = array<i32>} : memref<1x2x128xf32, #tpu.memory_space<vmem>>, vector<1x2x128xf32>,
    return
  }
  func.func @transform_0(%arg0: i32, %arg1: i32) -> (i32, i32, i32, i32) {
    %c0_i32 = arith.constant 0 : i32
    %c0_i32_0 = arith.constant 0 : i32
    %c0_i32_1 = arith.constant 0 : i32
    return %arg0, %c0_i32, %arg1, %c0_i32_0 : i32, i32, i32, i32
  }
  func.func @transform_1(%arg0: i32, %arg1: i32) -> (i32, i32, i32) {
    %c0_i32 = arith.constant 0 : i32
    %c0_i32_0 = arith.constant 0 : i32
    return %arg0, %arg1, %c0_i32 : i32, i32, i32
  }
}

</mosaic_0001>

<llo_original>
// kernel: dfl_forward.1
$region0: #{dfl_forward.1}
  #allocation0 [shape = 'u32[]', space=smem, size = 0x4, offset = 0x4, fixed_abs, tag = 'smem constant byte address 0x4 - core index']
  #allocation1 [shape = 'u32[144,128]{1,0:T(1,128)}', space=vmem, size = 0x12000, scoped, tag = 'internal scratch']
  %s0 = inlined_call_operand.vmem [shape: f32[2,16,2,128], index: 0, kind: input, shape index: {}]
  %s1 = inlined_call_operand.vmem [shape: f32[2,2,128], index: 1, kind: output, shape index: {}]
  %s2 = sld [smem:[#allocation0]]
  $region37: #{dfl_forward.1} parent=0
    _
  %s4 = ssub.s32 1, %s2
  %s5 = scalar_select 0, %s4, %s2
  loop: start=0, step=1, limit=4
  $region2: #{dfl_forward.1} parent=0 // loop_pre_header
    _
  $region3: #{dfl_forward.1} parent=0 // loop_header
    %s7 = sphi 0, %s11
    %p8 = scmp.ge.s32.totalorder %s7, 4
    %s14 = sphi 0, %s26
    %s15 = sphi 0, %s22
    %s16 = sphi 0, %s14
    %s17 = sphi 0, %s15
    %s18 = sphi 0, %s16
    %s19 = sphi 0, %s17
    %s31 = sphi 0, %s33
    %s34 = sphi 0, %s31
    %s35 = sphi 0, %s34
    %s51 = sphi 0, %s35
    %s59 = sphi 0, %s61
    %s62 = sphi 0, %s59
    %s63 = sphi 0, %s62
    %s79 = sphi 0, %s63
  $region4: #{dfl_forward.1} parent=0 // loop_header_branch
    %10 = sbr.rel (%p8) target = $region8
  $region5: #{dfl_forward.1} parent=0 // loop_body
    %s12 = ssub.s32 %s7, 1
    %s13 = ssub.s32 %s7, 2
    %s20 = sadd.s32 1, %s15
    %p21 = scmp.ge.s32.totalorder %s20, 1
    %s22 = scalar_select %p21, 0, %s20
    %s23 = sadd.s32 1, %s14
    %s24 = scalar_select %p21, %s23, %s14
    %p25 = scmp.ge.s32.totalorder %s24, 2
    %s26 = scalar_select %p25, 0, %s24
    %s27 = ssub.s32 %s14, %s26
    %s28 = ssub.s32 %s15, %s22
    %s29 = sor.u32 %s27, %s28
    %p30 = scmp.eq.s32.totalorder %s29, 0
    %s32 = sadd.s32 %s31, 1
    %s33 = scalar_select %p30, %s31, %s32
    %p36 = pneg %p30
    %p37 = scmp.eq.s32.totalorder %s7, 1
    %p38 = por %p36, %p37
    %p39 = scmp.ne.s32.totalorder %s31, %s34
    %p40 = scmp.eq.s32.totalorder %s7, 0
    %p41 = por %p39, %p40
    %p42 = scmp.ne.s32.totalorder %s31, %s34
    %p43 = scmp.eq.s32.totalorder %s12, 1
    %p44 = por %p42, %p43
    %p45 = scmp.ne.s32.totalorder %s34, %s35
    %p46 = scmp.eq.s32.totalorder %s12, 0
    %p47 = por %p45, %p46
    %p48 = scmp.ne.s32.totalorder %s34, %s35
    %p49 = scmp.eq.s32.totalorder %s13, 1
    %p50 = por %p48, %p49
    %p52 = scmp.ne.s32.totalorder %s35, %s51
    %p53 = scmp.eq.s32.totalorder %s13, 0
    %p54 = por %p52, %p53
    %s55 = ssub.s32 %s14, %s26
    %s56 = ssub.s32 %s15, %s22
    %s57 = sor.u32 %s55, %s56
    %p58 = scmp.eq.s32.totalorder %s57, 0
    %s60 = sadd.s32 %s59, 1
    %s61 = scalar_select %p58, %s59, %s60
    %p64 = pneg %p58
    %p65 = scmp.eq.s32.totalorder %s7, 1
    %p66 = por %p64, %p65
    %p67 = scmp.ne.s32.totalorder %s59, %s62
    %p68 = scmp.eq.s32.totalorder %s7, 0
    %p69 = por %p67, %p68
    %p70 = scmp.ne.s32.totalorder %s59, %s62
    %p71 = scmp.eq.s32.totalorder %s12, 1
    %p72 = por %p70, %p71
    %p73 = scmp.ne.s32.totalorder %s62, %s63
    %p74 = scmp.eq.s32.totalorder %s12, 0
    %p75 = por %p73, %p74
    %p76 = scmp.ne.s32.totalorder %s62, %s63
    %p77 = scmp.eq.s32.totalorder %s13, 1
    %p78 = por %p76, %p77
    %p80 = scmp.ne.s32.totalorder %s63, %s79
    %p81 = scmp.eq.s32.totalorder %s13, 0
    %p82 = por %p80, %p81
    %p83 = scmp.le.s32.totalorder 1, %s7
    %p84 = scmp.lt.s32.totalorder %s7, 3
    %p85 = pnand %p83, %p84
    %p86 = pneg %p85
    // Predicated region
    $region9: #{dfl_forward.1} parent=5 // pred_check
      _
    $region10: #{dfl_forward.1} parent=5 // pred_check_branch
      %88 = sbr.rel (%p85) target = $region12
    $region11: #{dfl_forward.1} parent=5 // pred_region
      %s89 = ssub.s32 %s7, 1
    $region12: #{dfl_forward.1} parent=5 // pred_fallthru
      _
    %p90 = scmp.lt.s32.totalorder %s7, 2
    // Predicated region
    $region13: #{dfl_forward.1} parent=5 // pred_check
      %p91 = pneg %p90
    $region14: #{dfl_forward.1} parent=5 // pred_check_branch
      %93 = sbr.rel (%p91) target = $region16
    $region15: #{dfl_forward.1} parent=5 // pred_region
      // Predicated region
      $region17: #{dfl_forward.1} parent=15 // pred_check
        %p94 = pneg %p41
      $region18: #{dfl_forward.1} parent=15 // pred_check_branch
        %96 = sbr.rel (%p94) target = $region20
      $region19: #{dfl_forward.1} parent=15 // pred_region
        %p97 = scmp.lt.s32.totalorder %s14, 1
        %s98 = scalar_select %p97, %s14, 1
        %p99 = scmp.lt.s32.totalorder %s15, 0
        %s100 = scalar_select %p99, %s15, 0
        %s101 = smul.addr %s98, 16
        %s102 = sadd.s32 %s100, %s101
        %s103 = smul.addr %s102, 2
        %s104 = scalar_lea.vmem %s0, %s103
      $region20: #{dfl_forward.1} parent=15 // pred_fallthru
        _
    $region16: #{dfl_forward.1} parent=5 // pred_fallthru
      _
    %p105 = scmp.le.s32.totalorder 1, %s7
    %p106 = scmp.lt.s32.totalorder %s7, 3
    %p107 = pnand %p105, %p106
    %p108 = pneg %p107
    // Predicated region
    $region21: #{dfl_forward.1} parent=5 // pred_check
      _
    $region22: #{dfl_forward.1} parent=5 // pred_check_branch
      %110 = sbr.rel (%p107) target = $region24
    $region23: #{dfl_forward.1} parent=5 // pred_region
      %s111 = ssub.s32 %s7, 1
      %p112 = scmp.lt.s32.totalorder %s16, 1
      %s113 = scalar_select %p112, %s16, 1
      %p114 = scmp.lt.s32.totalorder %s17, 0
      %s115 = scalar_select %p114, %s17, 0
      %s116 = smul.addr %s113, 16
      %s117 = sadd.s32 %s115, %s116
      %s118 = smul.addr %s117, 2
      %s119 = scalar_lea.vmem %s0, %s118
      %p120 = pneg %p47
      %p121 = pneg %p44
      %p122 = pneg %p75
      %p123 = pneg %p72
      %p124 = scmp.lt.s32.totalorder %s16, 1
      %s125 = scalar_select %p124, %s16, 1
      %p126 = scmp.lt.s32.totalorder %s17, 0
      %s127 = scalar_select %p126, %s17, 0
      %s128 = sadd.s32 %s127, %s125
      %s129 = smul.addr %s128, 2
      %s130 = scalar_lea.vmem %s1, %s129
      %p131 = scmp.lt.s32.totalorder %s16, 1
      %s132 = scalar_select %p131, %s16, 1
      %p133 = scmp.lt.s32.totalorder %s17, 0
      %s134 = scalar_select %p133, %s17, 0
      %s135 = smul.addr %s132, 16
      %s136 = sadd.s32 %s134, %s135
      %s137 = smul.addr %s136, 2
      %s138 = scalar_lea.vmem %s0, %s137
      %p139 = scmp.lt.s32.totalorder %s16, 1
      %s140 = scalar_select %p139, %s16, 1
      %p141 = scmp.lt.s32.totalorder %s17, 0
      %s142 = scalar_select %p141, %s17, 0
      %s143 = sadd.s32 %s142, %s140
      %s144 = smul.addr %s143, 2
      %s145 = scalar_lea.vmem %s1, %s144
      %v146 = vld [vmem:[%s138] sm:$0x3]
      %s147 = scalar_lea.vmem %s138, 2
      %v148 = vld [vmem:[%s147] sm:$0x3]
      %v149 = vmax.f32 %v146, %v148
      %s150 = scalar_lea.vmem %s138, 4
      %v151 = vld [vmem:[%s150] sm:$0x3]
      %v152 = vmax.f32 %v149, %v151
      %s153 = scalar_lea.vmem %s138, 6
      %v154 = vld [vmem:[%s153] sm:$0x3]
      %v155 = vmax.f32 %v152, %v154
      %s156 = scalar_lea.vmem %s138, 8
      %v157 = vld [vmem:[%s156] sm:$0x3]
      %v158 = vmax.f32 %v155, %v157
      %s159 = scalar_lea.vmem %s138, 10
      %v160 = vld [vmem:[%s159] sm:$0x3]
      %v161 = vmax.f32 %v158, %v160
      %s162 = scalar_lea.vmem %s138, 12
      %v163 = vld [vmem:[%s162] sm:$0x3]
      %v164 = vmax.f32 %v161, %v163
      %s165 = scalar_lea.vmem %s138, 14
      %v166 = vld [vmem:[%s165] sm:$0x3]
      %v167 = vmax.f32 %v164, %v166
      %s168 = scalar_lea.vmem %s138, 16
      %v169 = vld [vmem:[%s168] sm:$0x3]
      %v170 = vmax.f32 %v167, %v169
      %s171 = scalar_lea.vmem %s138, 18
      %v172 = vld [vmem:[%s171] sm:$0x3]
      %v173 = vmax.f32 %v170, %v172
      %s174 = scalar_lea.vmem %s138, 20
      %v175 = vld [vmem:[%s174] sm:$0x3]
      %v176 = vmax.f32 %v173, %v175
      %s177 = scalar_lea.vmem %s138, 22
      %v178 = vld [vmem:[%s177] sm:$0x3]
      %v179 = vmax.f32 %v176, %v178
      %s180 = scalar_lea.vmem %s138, 24
      %v181 = vld [vmem:[%s180] sm:$0x3]
      %v182 = vmax.f32 %v179, %v181
      %s183 = scalar_lea.vmem %s138, 26
      %v184 = vld [vmem:[%s183] sm:$0x3]
      %v185 = vmax.f32 %v182, %v184
      %s186 = scalar_lea.vmem %s138, 28
      %v187 = vld [vmem:[%s186] sm:$0x3]
      %v188 = vmax.f32 %v185, %v187
      %s189 = scalar_lea.vmem %s138, 30
      %v190 = vld [vmem:[%s189] sm:$0x3]
      %v191 = vmax.f32 %v188, %v190
      %v192 = vsub.f32 %v146, %v191
      %v193 = vmul.f32 %v192, 1.442695
      %v194 = vpow.pop %v193
      %v195 = vadd.f32 %v194, 0.0
      %v196 = vsub.f32 %v148, %v191
      %v197 = vmul.f32 %v196, 1.442695
      %v198 = vpow.pop %v197
      %v199 = vadd.f32 %v195, %v198
      %v200 = vadd.f32 %v198, 0.0
      %v201 = vsub.f32 %v151, %v191
      %v202 = vmul.f32 %v201, 1.442695
      %v203 = vpow.pop %v202
      %v204 = vadd.f32 %v199, %v203
      %v205 = vmul.f32 %v203, 2.0
      %v206 = vadd.f32 %v200, %v205
      %v207 = vsub.f32 %v154, %v191
      %v208 = vmul.f32 %v207, 1.442695
      %v209 = vpow.pop %v208
      %v210 = vadd.f32 %v204, %v209
      %v211 = vmul.f32 %v209, 3.0
      %v212 = vadd.f32 %v206, %v211
      %v213 = vsub.f32 %v157, %v191
      %v214 = vmul.f32 %v213, 1.442695
      %v215 = vpow.pop %v214
      %v216 = vadd.f32 %v210, %v215
      %v217 = vmul.f32 %v215, 4.0
      %v218 = vadd.f32 %v212, %v217
      %v219 = vsub.f32 %v160, %v191
      %v220 = vmul.f32 %v219, 1.442695
      %v221 = vpow.pop %v220
      %v222 = vadd.f32 %v216, %v221
      %v223 = vmul.f32 %v221, 5.0
      %v224 = vadd.f32 %v218, %v223
      %v225 = vsub.f32 %v163, %v191
      %v226 = vmul.f32 %v225, 1.442695
      %v227 = vpow.pop %v226
      %v228 = vadd.f32 %v222, %v227
      %v229 = vmul.f32 %v227, 6.0
      %v230 = vadd.f32 %v224, %v229
      %v231 = vsub.f32 %v166, %v191
      %v232 = vmul.f32 %v231, 1.442695
      %v233 = vpow.pop %v232
      %v234 = vadd.f32 %v228, %v233
      %v235 = vmul.f32 %v233, 7.0
      %v236 = vadd.f32 %v230, %v235
      %v237 = vsub.f32 %v169, %v191
      %v238 = vmul.f32 %v237, 1.442695
      %v239 = vpow.pop %v238
      %v240 = vadd.f32 %v234, %v239
      %v241 = vmul.f32 %v239, 8.0
      %v242 = vadd.f32 %v236, %v241
      %v243 = vsub.f32 %v172, %v191
      %v244 = vmul.f32 %v243, 1.442695
      %v245 = vpow.pop %v244
      %v246 = vadd.f32 %v240, %v245
      %v247 = vmul.f32 %v245, 9.0
      %v248 = vadd.f32 %v242, %v247
      %v249 = vsub.f32 %v175, %v191
      %v250 = vmul.f32 %v249, 1.442695
      %v251 = vpow.pop %v250
      %v252 = vadd.f32 %v246, %v251
      %v253 = vmul.f32 %v251, 10.0
      %v254 = vadd.f32 %v248, %v253
      %v255 = vsub.f32 %v178, %v191
      %v256 = vmul.f32 %v255, 1.442695
      %v257 = vpow.pop %v256
      %v258 = vadd.f32 %v252, %v257
      %v259 = vmul.f32 %v257, 11.0
      %v260 = vadd.f32 %v254, %v259
      %v261 = vsub.f32 %v181, %v191
      %v262 = vmul.f32 %v261, 1.442695
      %v263 = vpow.pop %v262
      %v264 = vadd.f32 %v258, %v263
      %v265 = vmul.f32 %v263, 12.0
      %v266 = vadd.f32 %v260, %v265
      %v267 = vsub.f32 %v184, %v191
      %v268 = vmul.f32 %v267, 1.442695
      %v269 = vpow.pop %v268
      %v270 = vadd.f32 %v264, %v269
      %v271 = vmul.f32 %v269, 13.0
      %v272 = vadd.f32 %v266, %v271
      %v273 = vsub.f32 %v187, %v191
      %v274 = vmul.f32 %v273, 1.442695
      %v275 = vpow.pop %v274
      %v276 = vadd.f32 %v270, %v275
      %v277 = vmul.f32 %v275, 14.0
      %v278 = vadd.f32 %v272, %v277
      %v279 = vsub.f32 %v190, %v191
      %v280 = vmul.f32 %v279, 1.442695
      %v281 = vpow.pop %v280
      %v282 = vadd.f32 %v276, %v281
      %v283 = vmul.f32 %v281, 15.0
      %v284 = vadd.f32 %v278, %v283
      %v285 = vrcp.pop %v282
      %v286 = vmul.f32 %v284, %v285
      %287 = vst [vmem:[%s145] sm:$0x3] %v286
      %p288 = scmp.lt.s32.totalorder %s16, 1
      %s289 = scalar_select %p288, %s16, 1
      %p290 = scmp.lt.s32.totalorder %s17, 0
      %s291 = scalar_select %p290, %s17, 0
      %s292 = sadd.s32 %s291, %s289
      %s293 = smul.addr %s292, 2
      %s294 = scalar_lea.vmem %s1, %s293
      // Predicated region
      $region25: #{dfl_forward.1} parent=23 // pred_check
        %p295 = pneg %p72
      $region26: #{dfl_forward.1} parent=23 // pred_check_branch
        %297 = sbr.rel (%p295) target = $region28
      $region27: #{dfl_forward.1} parent=23 // pred_region
        _
      $region28: #{dfl_forward.1} parent=23 // pred_fallthru
        _
    $region24: #{dfl_forward.1} parent=5 // pred_fallthru
      _
    %p298 = scmp.le.s32.totalorder 2, %s7
    // Predicated region
    $region29: #{dfl_forward.1} parent=5 // pred_check
      %p299 = pneg %p298
    $region30: #{dfl_forward.1} parent=5 // pred_check_branch
      %301 = sbr.rel (%p299) target = $region32
    $region31: #{dfl_forward.1} parent=5 // pred_region
      %s302 = ssub.s32 %s7, 2
      // Predicated region
      $region33: #{dfl_forward.1} parent=31 // pred_check
        %p303 = pneg %p78
      $region34: #{dfl_forward.1} parent=31 // pred_check_branch
        %305 = sbr.rel (%p303) target = $region36
      $region35: #{dfl_forward.1} parent=31 // pred_region
        %p306 = scmp.lt.s32.totalorder %s18, 1
        %s307 = scalar_select %p306, %s18, 1
        %p308 = scmp.lt.s32.totalorder %s19, 0
        %s309 = scalar_select %p308, %s19, 0
        %s310 = sadd.s32 %s309, %s307
        %s311 = smul.addr %s310, 2
        %s312 = scalar_lea.vmem %s1, %s311
      $region36: #{dfl_forward.1} parent=31 // pred_fallthru
        _
    $region32: #{dfl_forward.1} parent=5 // pred_fallthru
      _
  $region6: #{dfl_forward.1} parent=0 // loop_footer
    %s11 = sadd.s32 1, %s7
  $region7: #{dfl_forward.1} parent=0 // loop_footer_branch
    %6 = sbr.rel target = $region3
  $region8: #{dfl_forward.1} parent=0 // loop_exit
    _

</llo_original>
